<compile_context>
chip_gen: v6e
topology: v6e:2x2x1
jax: 0.10.0
libtpu: 0.0.40
codegen_flags: <defaults>
</compile_context>

<pallas_src>
import jax
import jax.numpy as jnp
from jax.experimental import pallas as pl
from jax.experimental.pallas import tpu as pltpu

# Model hyper-parameters (small, consistent with the module's __init__)
INPUT_DIM = 4            # input_dim
SEQ_LEN = 8              # input_step / sequence_length
HIDDEN = 32              # hidden_layer_size
NUM_LAYERS = 2           # num_layers (wavefront kernel below is specialized to 2)
OUTPUT_STEP = 3          # output_step
OUTPUT_DIM = 2           # output_dim
OUT_FEATS = OUTPUT_STEP * OUTPUT_DIM
OUT_PAD = 128            # lane-padded width of the Linear output

assert NUM_LAYERS == 2, "wavefront kernel is specialized to 2 LSTM layers"


def lstm_wavefront_kernel(x_ref, wx_ref, badd_ref, wbig_ref, wo_ref, bo_ref, out_ref):
    """2-layer LSTM (batch=1) + Linear head, wavefront-interleaved over layers.

    x_ref    : (T, H)        layer-0 input, zero-padded from INPUT_DIM to H lanes
    wx_ref   : (H, 8H)       layer-0 input->gate weights, permuted cols [i0 i1 f0 f1 g0 g1 o0 o1]
                             (layer-1 column blocks are zero)
    badd_ref : (1, 8H)       [b0_i, b1_i, b0_f, b1_f, b0_g, b1_g, b0_o, b1_o], b = b_ih + b_hh
    wbig_ref : (2H, 8H)      rows 0..H-1 multiply h0 (whh0 in layer-0 cols, wih1 in layer-1 cols),
                             rows H..2H-1 multiply h1 (whh1 in layer-1 cols, zeros in layer-0 cols)
    wo_ref   : (2H, OUT_PAD) Linear weight^T, rows 0..H-1 zero (so z @ wo == h1_last @ W_out^T)
    bo_ref   : (1, OUT_PAD)  Linear bias (lane-padded)
    out_ref  : (1, OUT_PAD)  prediction for the last timestep (lane-padded)
    """
    T, H = SEQ_LEN, HIDDEN

    # Hoisted: layer-0 input projection + both layers' biases for the whole sequence,
    # already in the permuted [i0 i1 f0 f1 g0 g1 o0 o1] gate-column layout.
    adds = (jnp.dot(x_ref[...], wx_ref[...], preferred_element_type=jnp.float32)
            + badd_ref[...])                                   # (T, 8H)

    wbig = wbig_ref[...]                                       # (2H, 8H)

    # Packed wavefront state: z = [h0 | h1], c = [c0 | c1]  (lanes 0..H-1 / H..2H-1).
    z = jnp.zeros((1, 2 * H), jnp.float32)
    c = jnp.zeros((1, 2 * H), jnp.float32)
    lane = jax.lax.broadcasted_iota(jnp.int32, (1, 2 * H), 1)
    mask_l0 = (lane < H).astype(jnp.float32)                   # keep layer-0 half only

    # Stage s: layer-0 step s and layer-1 step s-1 (both depend only on last-stage state,
    # so their work shares one MXU push and stacked EUP pushes).
    for s in range(T + 1):                                     # static unroll
        a = min(s, T - 1)                                      # stage T reuses any row;
        pre = adds[a:a + 1, :]                                 # its layer-0 half is discarded
        if s > 0:
            pre = pre + jnp.dot(z, wbig, preferred_element_type=jnp.float32)  # (1, 8H)

        sg = jax.nn.sigmoid(pre)                               # one EUP push, both layers
        th = jnp.tanh(pre)                                     # one EUP push, both layers
        i_g = sg[:, 0 * H:2 * H]                               # [i0 | i1]
        f_g = sg[:, 2 * H:4 * H]                               # [f0 | f1]
        g_g = th[:, 4 * H:6 * H]                               # [g0 | g1]
        o_g = sg[:, 6 * H:8 * H]                               # [o0 | o1]

        c = f_g * c + i_g * g_g                                # (1, 2H) packed cell update
        z = o_g * jnp.tanh(c)                                  # (1, 2H) packed hidden update

        if s == 0:
            # Layer-1 must start from zero state: drop the spurious "step -1" half.
            z = z * mask_l0
            c = c * mask_l0

    # Linear head on h1[T-1] (wo rows for the layer-0 half are zero).
    out_ref[...] = (jnp.dot(z, wo_ref[...], preferred_element_type=jnp.float32)
                    + bo_ref[...])


@jax.jit
def rnn_forward(input_seq, params):
    """input_seq: (1, SEQ_LEN, INPUT_DIM) float32 -> (OUTPUT_STEP, OUTPUT_DIM)."""
    wxbig, badd, wbig, wo_pad, bo_pad = params
    x = input_seq[0]                                                   # (T, input_dim)
    x_pad = jnp.zeros((SEQ_LEN, HIDDEN), jnp.float32).at[:, :INPUT_DIM].set(x)

    out = pl.pallas_call(
        lstm_wavefront_kernel,
        out_shape=jax.ShapeDtypeStruct((1, OUT_PAD), jnp.float32),
        in_specs=[pl.BlockSpec(memory_space=pltpu.MemorySpace.VMEM)] * 5
                 + [pl.BlockSpec(memory_space=pltpu.MemorySpace.VMEM)],
        out_specs=pl.BlockSpec(memory_space=pltpu.MemorySpace.VMEM),
    )(x_pad, wxbig, badd, wbig, wo_pad, bo_pad)

    return out[0, :OUT_FEATS].reshape(OUTPUT_STEP, OUTPUT_DIM)


def make_torch_params(key):
    """Deterministic synthetic parameters with exact PyTorch shapes/semantics."""
    ks = jax.random.split(key, 4 * NUM_LAYERS + 2)
    scale = 1.0 / jnp.sqrt(HIDDEN)
    raw = {}
    for l in range(NUM_LAYERS):
        in_size = INPUT_DIM if l == 0 else HIDDEN
        raw[f"w_ih_l{l}"] = jax.random.uniform(ks[4 * l + 0], (4 * HIDDEN, in_size),
                                               minval=-scale, maxval=scale)
        raw[f"w_hh_l{l}"] = jax.random.uniform(ks[4 * l + 1], (4 * HIDDEN, HIDDEN),
                                               minval=-scale, maxval=scale)
        raw[f"b_ih_l{l}"] = jax.random.uniform(ks[4 * l + 2], (4 * HIDDEN,),
                                               minval=-scale, maxval=scale)
        raw[f"b_hh_l{l}"] = jax.random.uniform(ks[4 * l + 3], (4 * HIDDEN,),
                                               minval=-scale, maxval=scale)
    raw["w_out"] = jax.random.uniform(ks[-2], (OUT_FEATS, HIDDEN), minval=-scale, maxval=scale)
    raw["b_out"] = jax.random.uniform(ks[-1], (OUT_FEATS,), minval=-scale, maxval=scale)
    return raw


def pack_params(raw):
    """Repack PyTorch-shaped weights into the permuted block layout used by the kernel.

    Column layout (8H = 256 lanes): blocks of H in order [i0, i1, f0, f1, g0, g1, o0, o1].
    """
    H = HIDDEN
    b0 = raw["b_ih_l0"] + raw["b_hh_l0"]
    b1 = raw["b_ih_l1"] + raw["b_hh_l1"]

    wxbig = jnp.zeros((H, 8 * H), jnp.float32)
    badd = jnp.zeros((1, 8 * H), jnp.float32)
    wbig = jnp.zeros((2 * H, 8 * H), jnp.float32)
    for g in range(4):                                   # PyTorch gate order: i, f, g, o
        c0 = 2 * g * H                                   # layer-0 column block for gate g
        c1 = (2 * g + 1) * H                             # layer-1 column block for gate g
        # Layer-0 input->gate weights (rows = padded input features).
        wxbig = wxbig.at[:INPUT_DIM, c0:c0 + H].set(raw["w_ih_l0"][g * H:(g + 1) * H, :].T)
        # Combined biases.
        badd = badd.at[0, c0:c0 + H].set(b0[g * H:(g + 1) * H])
        badd = badd.at[0, c1:c1 + H].set(b1[g * H:(g + 1) * H])
        # Rows 0..H-1 multiply h0: layer-0 recurrent + layer-1 input weights.
        wbig = wbig.at[:H, c0:c0 + H].set(raw["w_hh_l0"][g * H:(g + 1) * H, :].T)
        wbig = wbig.at[:H, c1:c1 + H].set(raw["w_ih_l1"][g * H:(g + 1) * H, :].T)
        # Rows H..2H-1 multiply h1: layer-1 recurrent weights.
        wbig = wbig.at[H:, c1:c1 + H].set(raw["w_hh_l1"][g * H:(g + 1) * H, :].T)

    wo_pad = jnp.zeros((2 * H, OUT_PAD), jnp.float32).at[H:, :OUT_FEATS].set(raw["w_out"].T)
    bo_pad = jnp.zeros((1, OUT_PAD), jnp.float32).at[0, :OUT_FEATS].set(raw["b_out"])
    return wxbig, badd, wbig, wo_pad, bo_pad


def reference_forward(input_seq, raw):
    """Pure-JAX mirror of nn.LSTM(batch_first) + nn.Linear on raw PyTorch-shaped weights."""
    H = HIDDEN
    seq = input_seq[0]                                   # (T, in)
    for l in range(NUM_LAYERS):
        w_ih, w_hh = raw[f"w_ih_l{l}"], raw[f"w_hh_l{l}"]
        b = raw[f"b_ih_l{l}"] + raw[f"b_hh_l{l}"]
        h = jnp.zeros((H,), jnp.float32)
        c = jnp.zeros((H,), jnp.float32)
        outs = []
        for t in range(SEQ_LEN):
            g = w_ih @ seq[t] + w_hh @ h + b             # (4H,), gate order i, f, g, o
            i_g = jax.nn.sigmoid(g[:H])
            f_g = jax.nn.sigmoid(g[H:2 * H])
            g_g = jnp.tanh(g[2 * H:3 * H])
            o_g = jax.nn.sigmoid(g[3 * H:])
            c = f_g * c + i_g * g_g
            h = o_g * jnp.tanh(c)
            outs.append(h)
        seq = jnp.stack(outs, axis=0)                    # (T, H)
    out = raw["w_out"] @ seq[-1] + raw["b_out"]
    return out.reshape(OUTPUT_STEP, OUTPUT_DIM)


if __name__ == "__main__":
    key = jax.random.PRNGKey(0)
    k_param, k_x = jax.random.split(key)
    raw = make_torch_params(k_param)
    params = pack_params(raw)
    input_seq = jax.random.normal(k_x, (1, SEQ_LEN, INPUT_DIM), dtype=jnp.float32)

    preds = jax.block_until_ready(rnn_forward(input_seq, params))
    assert preds.shape == (OUTPUT_STEP, OUTPUT_DIM)

    ref = reference_forward(input_seq, raw)
    assert jnp.allclose(preds, ref, atol=1e-4, rtol=1e-4), (preds, ref)

    print("KERNEL_OK")
</pallas_src>

<mosaic_0001>
module attributes {stable_mosaic.version = 11 : i64} {
  func.func @lstm_wavefront_kernel(%arg0: memref<8x32xf32, #tpu.memory_space<vmem>>, %arg1: memref<32x256xf32, #tpu.memory_space<vmem>>, %arg2: memref<1x256xf32, #tpu.memory_space<vmem>>, %arg3: memref<64x256xf32, #tpu.memory_space<vmem>>, %arg4: memref<64x128xf32, #tpu.memory_space<vmem>>, %arg5: memref<1x128xf32, #tpu.memory_space<vmem>>, %arg6: memref<1x128xf32, #tpu.memory_space<vmem>>) attributes {dimension_semantics = [], scalar_prefetch = 0 : i64, scratch_operands = 0 : i64, tpu.core_type = #tpu.core_type<tc>} {
    %c0 = arith.constant 0 : index
    %c0_0 = arith.constant 0 : index
    %0 = vector.load %arg0[%c0, %c0_0] : memref<8x32xf32, #tpu.memory_space<vmem>>, vector<8x32xf32>
    %c0_1 = arith.constant 0 : index
    %c0_2 = arith.constant 0 : index
    %1 = vector.load %arg1[%c0_1, %c0_2] : memref<32x256xf32, #tpu.memory_space<vmem>>, vector<32x256xf32>
    %cst = arith.constant dense<0.000000e+00> : vector<8x256xf32>
    %2 = tpu.matmul %0, %1, %cst {dimension_numbers = #tpu.dot_dimension_numbers<[1], [0], [0], [1], [0, 0, 1, 1], [], []>} : vector<8x32xf32>, vector<32x256xf32>, vector<8x256xf32> -> vector<8x256xf32>
    %c0_3 = arith.constant 0 : index
    %c0_4 = arith.constant 0 : index
    %3 = vector.load %arg2[%c0_3, %c0_4] : memref<1x256xf32, #tpu.memory_space<vmem>>, vector<1x256xf32>
    %4 = vector.broadcast %3 : vector<1x256xf32> to vector<8x256xf32>
    %5 = arith.addf %2, %4 : vector<8x256xf32>
    %c0_5 = arith.constant 0 : index
    %c0_6 = arith.constant 0 : index
    %6 = vector.load %arg3[%c0_5, %c0_6] : memref<64x256xf32, #tpu.memory_space<vmem>>, vector<64x256xf32>
    %cst_7 = arith.constant 0.000000e+00 : f32
    %7 = vector.broadcast %cst_7 : f32 to vector<1x64xf32>
    %8 = tpu.iota {dimensions = array<i32: 1>} : vector<1x64xi32>
    %c32_i32 = arith.constant 32 : i32
    %9 = vector.broadcast %c32_i32 : i32 to vector<1x64xi32>
    %10 = arith.cmpi slt, %8, %9 : vector<1x64xi32>
    %11 = arith.extui %10 : vector<1x64xi1> to vector<1x64xi32>
    %12 = arith.sitofp %11 : vector<1x64xi32> to vector<1x64xf32>
    %13 = vector.extract_strided_slice %5 {offsets = [0, 0], sizes = [1, 256], strides = [1, 1]} : vector<8x256xf32> to vector<1x256xf32>
    %14 = arith.negf %13 : vector<1x256xf32>
    %15 = math.exp %14 : vector<1x256xf32>
    %cst_8 = arith.constant 1.000000e+00 : f32
    %16 = vector.broadcast %cst_8 : f32 to vector<1x256xf32>
    %17 = arith.addf %16, %15 : vector<1x256xf32>
    %18 = arith.divf %16, %17 : vector<1x256xf32>
    %19 = math.tanh %13 : vector<1x256xf32>
    %20 = vector.extract_strided_slice %18 {offsets = [0, 0], sizes = [1, 64], strides = [1, 1]} : vector<1x256xf32> to vector<1x64xf32>
    %21 = vector.extract_strided_slice %18 {offsets = [0, 64], sizes = [1, 64], strides = [1, 1]} : vector<1x256xf32> to vector<1x64xf32>
    %22 = vector.extract_strided_slice %19 {offsets = [0, 128], sizes = [1, 64], strides = [1, 1]} : vector<1x256xf32> to vector<1x64xf32>
    %23 = vector.extract_strided_slice %18 {offsets = [0, 192], sizes = [1, 64], strides = [1, 1]} : vector<1x256xf32> to vector<1x64xf32>
    %24 = arith.mulf %21, %7 : vector<1x64xf32>
    %25 = arith.mulf %20, %22 : vector<1x64xf32>
    %26 = arith.addf %24, %25 : vector<1x64xf32>
    %27 = math.tanh %26 : vector<1x64xf32>
    %28 = arith.mulf %23, %27 : vector<1x64xf32>
    %29 = arith.mulf %28, %12 : vector<1x64xf32>
    %30 = arith.mulf %26, %12 : vector<1x64xf32>
    %31 = vector.extract_strided_slice %5 {offsets = [1, 0], sizes = [1, 256], strides = [1, 1]} : vector<8x256xf32> to vector<1x256xf32>
    %cst_9 = arith.constant dense<0.000000e+00> : vector<1x256xf32>
    %32 = tpu.matmul %29, %6, %cst_9 {dimension_numbers = #tpu.dot_dimension_numbers<[1], [0], [0], [1], [0, 0, 1, 1], [], []>} : vector<1x64xf32>, vector<64x256xf32>, vector<1x256xf32> -> vector<1x256xf32>
    %33 = arith.addf %31, %32 : vector<1x256xf32>
    %34 = arith.negf %33 : vector<1x256xf32>
    %35 = math.exp %34 : vector<1x256xf32>
    %cst_10 = arith.constant 1.000000e+00 : f32
    %36 = vector.broadcast %cst_10 : f32 to vector<1x256xf32>
    %37 = arith.addf %36, %35 : vector<1x256xf32>
    %38 = arith.divf %36, %37 : vector<1x256xf32>
    %39 = math.tanh %33 : vector<1x256xf32>
    %40 = vector.extract_strided_slice %38 {offsets = [0, 0], sizes = [1, 64], strides = [1, 1]} : vector<1x256xf32> to vector<1x64xf32>
    %41 = vector.extract_strided_slice %38 {offsets = [0, 64], sizes = [1, 64], strides = [1, 1]} : vector<1x256xf32> to vector<1x64xf32>
    %42 = vector.extract_strided_slice %39 {offsets = [0, 128], sizes = [1, 64], strides = [1, 1]} : vector<1x256xf32> to vector<1x64xf32>
    %43 = vector.extract_strided_slice %38 {offsets = [0, 192], sizes = [1, 64], strides = [1, 1]} : vector<1x256xf32> to vector<1x64xf32>
    %44 = arith.mulf %41, %30 : vector<1x64xf32>
    %45 = arith.mulf %40, %42 : vector<1x64xf32>
    %46 = arith.addf %44, %45 : vector<1x64xf32>
    %47 = math.tanh %46 : vector<1x64xf32>
    %48 = arith.mulf %43, %47 : vector<1x64xf32>
    %49 = vector.extract_strided_slice %5 {offsets = [2, 0], sizes = [1, 256], strides = [1, 1]} : vector<8x256xf32> to vector<1x256xf32>
    %cst_11 = arith.constant dense<0.000000e+00> : vector<1x256xf32>
    %50 = tpu.matmul %48, %6, %cst_11 {dimension_numbers = #tpu.dot_dimension_numbers<[1], [0], [0], [1], [0, 0, 1, 1], [], []>} : vector<1x64xf32>, vector<64x256xf32>, vector<1x256xf32> -> vector<1x256xf32>
    %51 = arith.addf %49, %50 : vector<1x256xf32>
    %52 = arith.negf %51 : vector<1x256xf32>
    %53 = math.exp %52 : vector<1x256xf32>
    %cst_12 = arith.constant 1.000000e+00 : f32
    %54 = vector.broadcast %cst_12 : f32 to vector<1x256xf32>
    %55 = arith.addf %54, %53 : vector<1x256xf32>
    %56 = arith.divf %54, %55 : vector<1x256xf32>
    %57 = math.tanh %51 : vector<1x256xf32>
    %58 = vector.extract_strided_slice %56 {offsets = [0, 0], sizes = [1, 64], strides = [1, 1]} : vector<1x256xf32> to vector<1x64xf32>
    %59 = vector.extract_strided_slice %56 {offsets = [0, 64], sizes = [1, 64], strides = [1, 1]} : vector<1x256xf32> to vector<1x64xf32>
    %60 = vector.extract_strided_slice %57 {offsets = [0, 128], sizes = [1, 64], strides = [1, 1]} : vector<1x256xf32> to vector<1x64xf32>
    %61 = vector.extract_strided_slice %56 {offsets = [0, 192], sizes = [1, 64], strides = [1, 1]} : vector<1x256xf32> to vector<1x64xf32>
    %62 = arith.mulf %59, %46 : vector<1x64xf32>
    %63 = arith.mulf %58, %60 : vector<1x64xf32>
    %64 = arith.addf %62, %63 : vector<1x64xf32>
    %65 = math.tanh %64 : vector<1x64xf32>
    %66 = arith.mulf %61, %65 : vector<1x64xf32>
    %67 = vector.extract_strided_slice %5 {offsets = [3, 0], sizes = [1, 256], strides = [1, 1]} : vector<8x256xf32> to vector<1x256xf32>
    %cst_13 = arith.constant dense<0.000000e+00> : vector<1x256xf32>
    %68 = tpu.matmul %66, %6, %cst_13 {dimension_numbers = #tpu.dot_dimension_numbers<[1], [0], [0], [1], [0, 0, 1, 1], [], []>} : vector<1x64xf32>, vector<64x256xf32>, vector<1x256xf32> -> vector<1x256xf32>
    %69 = arith.addf %67, %68 : vector<1x256xf32>
    %70 = arith.negf %69 : vector<1x256xf32>
    %71 = math.exp %70 : vector<1x256xf32>
    %cst_14 = arith.constant 1.000000e+00 : f32
    %72 = vector.broadcast %cst_14 : f32 to vector<1x256xf32>
    %73 = arith.addf %72, %71 : vector<1x256xf32>
    %74 = arith.divf %72, %73 : vector<1x256xf32>
    %75 = math.tanh %69 : vector<1x256xf32>
    %76 = vector.extract_strided_slice %74 {offsets = [0, 0], sizes = [1, 64], strides = [1, 1]} : vector<1x256xf32> to vector<1x64xf32>
    %77 = vector.extract_strided_slice %74 {offsets = [0, 64], sizes = [1, 64], strides = [1, 1]} : vector<1x256xf32> to vector<1x64xf32>
    %78 = vector.extract_strided_slice %75 {offsets = [0, 128], sizes = [1, 64], strides = [1, 1]} : vector<1x256xf32> to vector<1x64xf32>
    %79 = vector.extract_strided_slice %74 {offsets = [0, 192], sizes = [1, 64], strides = [1, 1]} : vector<1x256xf32> to vector<1x64xf32>
    %80 = arith.mulf %77, %64 : vector<1x64xf32>
    %81 = arith.mulf %76, %78 : vector<1x64xf32>
    %82 = arith.addf %80, %81 : vector<1x64xf32>
    %83 = math.tanh %82 : vector<1x64xf32>
    %84 = arith.mulf %79, %83 : vector<1x64xf32>
    %85 = vector.extract_strided_slice %5 {offsets = [4, 0], sizes = [1, 256], strides = [1, 1]} : vector<8x256xf32> to vector<1x256xf32>
    %cst_15 = arith.constant dense<0.000000e+00> : vector<1x256xf32>
    %86 = tpu.matmul %84, %6, %cst_15 {dimension_numbers = #tpu.dot_dimension_numbers<[1], [0], [0], [1], [0, 0, 1, 1], [], []>} : vector<1x64xf32>, vector<64x256xf32>, vector<1x256xf32> -> vector<1x256xf32>
    %87 = arith.addf %85, %86 : vector<1x256xf32>
    %88 = arith.negf %87 : vector<1x256xf32>
    %89 = math.exp %88 : vector<1x256xf32>
    %cst_16 = arith.constant 1.000000e+00 : f32
    %90 = vector.broadcast %cst_16 : f32 to vector<1x256xf32>
    %91 = arith.addf %90, %89 : vector<1x256xf32>
    %92 = arith.divf %90, %91 : vector<1x256xf32>
    %93 = math.tanh %87 : vector<1x256xf32>
    %94 = vector.extract_strided_slice %92 {offsets = [0, 0], sizes = [1, 64], strides = [1, 1]} : vector<1x256xf32> to vector<1x64xf32>
    %95 = vector.extract_strided_slice %92 {offsets = [0, 64], sizes = [1, 64], strides = [1, 1]} : vector<1x256xf32> to vector<1x64xf32>
    %96 = vector.extract_strided_slice %93 {offsets = [0, 128], sizes = [1, 64], strides = [1, 1]} : vector<1x256xf32> to vector<1x64xf32>
    %97 = vector.extract_strided_slice %92 {offsets = [0, 192], sizes = [1, 64], strides = [1, 1]} : vector<1x256xf32> to vector<1x64xf32>
    %98 = arith.mulf %95, %82 : vector<1x64xf32>
    %99 = arith.mulf %94, %96 : vector<1x64xf32>
    %100 = arith.addf %98, %99 : vector<1x64xf32>
    %101 = math.tanh %100 : vector<1x64xf32>
    %102 = arith.mulf %97, %101 : vector<1x64xf32>
    %103 = vector.extract_strided_slice %5 {offsets = [5, 0], sizes = [1, 256], strides = [1, 1]} : vector<8x256xf32> to vector<1x256xf32>
    %cst_17 = arith.constant dense<0.000000e+00> : vector<1x256xf32>
    %104 = tpu.matmul %102, %6, %cst_17 {dimension_numbers = #tpu.dot_dimension_numbers<[1], [0], [0], [1], [0, 0, 1, 1], [], []>} : vector<1x64xf32>, vector<64x256xf32>, vector<1x256xf32> -> vector<1x256xf32>
    %105 = arith.addf %103, %104 : vector<1x256xf32>
    %106 = arith.negf %105 : vector<1x256xf32>
    %107 = math.exp %106 : vector<1x256xf32>
    %cst_18 = arith.constant 1.000000e+00 : f32
    %108 = vector.broadcast %cst_18 : f32 to vector<1x256xf32>
    %109 = arith.addf %108, %107 : vector<1x256xf32>
    %110 = arith.divf %108, %109 : vector<1x256xf32>
    %111 = math.tanh %105 : vector<1x256xf32>
    %112 = vector.extract_strided_slice %110 {offsets = [0, 0], sizes = [1, 64], strides = [1, 1]} : vector<1x256xf32> to vector<1x64xf32>
    %113 = vector.extract_strided_slice %110 {offsets = [0, 64], sizes = [1, 64], strides = [1, 1]} : vector<1x256xf32> to vector<1x64xf32>
    %114 = vector.extract_strided_slice %111 {offsets = [0, 128], sizes = [1, 64], strides = [1, 1]} : vector<1x256xf32> to vector<1x64xf32>
    %115 = vector.extract_strided_slice %110 {offsets = [0, 192], sizes = [1, 64], strides = [1, 1]} : vector<1x256xf32> to vector<1x64xf32>
    %116 = arith.mulf %113, %100 : vector<1x64xf32>
    %117 = arith.mulf %112, %114 : vector<1x64xf32>
    %118 = arith.addf %116, %117 : vector<1x64xf32>
    %119 = math.tanh %118 : vector<1x64xf32>
    %120 = arith.mulf %115, %119 : vector<1x64xf32>
    %121 = vector.extract_strided_slice %5 {offsets = [6, 0], sizes = [1, 256], strides = [1, 1]} : vector<8x256xf32> to vector<1x256xf32>
    %cst_19 = arith.constant dense<0.000000e+00> : vector<1x256xf32>
    %122 = tpu.matmul %120, %6, %cst_19 {dimension_numbers = #tpu.dot_dimension_numbers<[1], [0], [0], [1], [0, 0, 1, 1], [], []>} : vector<1x64xf32>, vector<64x256xf32>, vector<1x256xf32> -> vector<1x256xf32>
    %123 = arith.addf %121, %122 : vector<1x256xf32>
    %124 = arith.negf %123 : vector<1x256xf32>
    %125 = math.exp %124 : vector<1x256xf32>
    %cst_20 = arith.constant 1.000000e+00 : f32
    %126 = vector.broadcast %cst_20 : f32 to vector<1x256xf32>
    %127 = arith.addf %126, %125 : vector<1x256xf32>
    %128 = arith.divf %126, %127 : vector<1x256xf32>
    %129 = math.tanh %123 : vector<1x256xf32>
    %130 = vector.extract_strided_slice %128 {offsets = [0, 0], sizes = [1, 64], strides = [1, 1]} : vector<1x256xf32> to vector<1x64xf32>
    %131 = vector.extract_strided_slice %128 {offsets = [0, 64], sizes = [1, 64], strides = [1, 1]} : vector<1x256xf32> to vector<1x64xf32>
    %132 = vector.extract_strided_slice %129 {offsets = [0, 128], sizes = [1, 64], strides = [1, 1]} : vector<1x256xf32> to vector<1x64xf32>
    %133 = vector.extract_strided_slice %128 {offsets = [0, 192], sizes = [1, 64], strides = [1, 1]} : vector<1x256xf32> to vector<1x64xf32>
    %134 = arith.mulf %131, %118 : vector<1x64xf32>
    %135 = arith.mulf %130, %132 : vector<1x64xf32>
    %136 = arith.addf %134, %135 : vector<1x64xf32>
    %137 = math.tanh %136 : vector<1x64xf32>
    %138 = arith.mulf %133, %137 : vector<1x64xf32>
    %139 = vector.extract_strided_slice %5 {offsets = [7, 0], sizes = [1, 256], strides = [1, 1]} : vector<8x256xf32> to vector<1x256xf32>
    %cst_21 = arith.constant dense<0.000000e+00> : vector<1x256xf32>
    %140 = tpu.matmul %138, %6, %cst_21 {dimension_numbers = #tpu.dot_dimension_numbers<[1], [0], [0], [1], [0, 0, 1, 1], [], []>} : vector<1x64xf32>, vector<64x256xf32>, vector<1x256xf32> -> vector<1x256xf32>
    %141 = arith.addf %139, %140 : vector<1x256xf32>
    %142 = arith.negf %141 : vector<1x256xf32>
    %143 = math.exp %142 : vector<1x256xf32>
    %cst_22 = arith.constant 1.000000e+00 : f32
    %144 = vector.broadcast %cst_22 : f32 to vector<1x256xf32>
    %145 = arith.addf %144, %143 : vector<1x256xf32>
    %146 = arith.divf %144, %145 : vector<1x256xf32>
    %147 = math.tanh %141 : vector<1x256xf32>
    %148 = vector.extract_strided_slice %146 {offsets = [0, 0], sizes = [1, 64], strides = [1, 1]} : vector<1x256xf32> to vector<1x64xf32>
    %149 = vector.extract_strided_slice %146 {offsets = [0, 64], sizes = [1, 64], strides = [1, 1]} : vector<1x256xf32> to vector<1x64xf32>
    %150 = vector.extract_strided_slice %147 {offsets = [0, 128], sizes = [1, 64], strides = [1, 1]} : vector<1x256xf32> to vector<1x64xf32>
    %151 = vector.extract_strided_slice %146 {offsets = [0, 192], sizes = [1, 64], strides = [1, 1]} : vector<1x256xf32> to vector<1x64xf32>
    %152 = arith.mulf %149, %136 : vector<1x64xf32>
    %153 = arith.mulf %148, %150 : vector<1x64xf32>
    %154 = arith.addf %152, %153 : vector<1x64xf32>
    %155 = math.tanh %154 : vector<1x64xf32>
    %156 = arith.mulf %151, %155 : vector<1x64xf32>
    %157 = vector.extract_strided_slice %5 {offsets = [7, 0], sizes = [1, 256], strides = [1, 1]} : vector<8x256xf32> to vector<1x256xf32>
    %cst_23 = arith.constant dense<0.000000e+00> : vector<1x256xf32>
    %158 = tpu.matmul %156, %6, %cst_23 {dimension_numbers = #tpu.dot_dimension_numbers<[1], [0], [0], [1], [0, 0, 1, 1], [], []>} : vector<1x64xf32>, vector<64x256xf32>, vector<1x256xf32> -> vector<1x256xf32>
    %159 = arith.addf %157, %158 : vector<1x256xf32>
    %160 = arith.negf %159 : vector<1x256xf32>
    %161 = math.exp %160 : vector<1x256xf32>
    %cst_24 = arith.constant 1.000000e+00 : f32
    %162 = vector.broadcast %cst_24 : f32 to vector<1x256xf32>
    %163 = arith.addf %162, %161 : vector<1x256xf32>
    %164 = arith.divf %162, %163 : vector<1x256xf32>
    %165 = math.tanh %159 : vector<1x256xf32>
    %166 = vector.extract_strided_slice %164 {offsets = [0, 0], sizes = [1, 64], strides = [1, 1]} : vector<1x256xf32> to vector<1x64xf32>
    %167 = vector.extract_strided_slice %164 {offsets = [0, 64], sizes = [1, 64], strides = [1, 1]} : vector<1x256xf32> to vector<1x64xf32>
    %168 = vector.extract_strided_slice %165 {offsets = [0, 128], sizes = [1, 64], strides = [1, 1]} : vector<1x256xf32> to vector<1x64xf32>
    %169 = vector.extract_strided_slice %164 {offsets = [0, 192], sizes = [1, 64], strides = [1, 1]} : vector<1x256xf32> to vector<1x64xf32>
    %170 = arith.mulf %167, %154 : vector<1x64xf32>
    %171 = arith.mulf %166, %168 : vector<1x64xf32>
    %172 = arith.addf %170, %171 : vector<1x64xf32>
    %173 = math.tanh %172 : vector<1x64xf32>
    %174 = arith.mulf %169, %173 : vector<1x64xf32>
    %c0_25 = arith.constant 0 : index
    %c0_26 = arith.constant 0 : index
    %175 = vector.load %arg4[%c0_25, %c0_26] : memref<64x128xf32, #tpu.memory_space<vmem>>, vector<64x128xf32>
    %cst_27 = arith.constant dense<0.000000e+00> : vector<1x128xf32>
    %176 = tpu.matmul %174, %175, %cst_27 {dimension_numbers = #tpu.dot_dimension_numbers<[1], [0], [0], [1], [0, 0, 1, 1], [], []>} : vector<1x64xf32>, vector<64x128xf32>, vector<1x128xf32> -> vector<1x128xf32>
    %c0_28 = arith.constant 0 : index
    %c0_29 = arith.constant 0 : index
    %177 = vector.load %arg5[%c0_28, %c0_29] : memref<1x128xf32, #tpu.memory_space<vmem>>, vector<1x128xf32>
    %178 = arith.addf %176, %177 : vector<1x128xf32>
    %c0_30 = arith.constant 0 : index
    %c0_31 = arith.constant 0 : index
    %179 = vector.load %arg6[%c0_30, %c0_31] : memref<1x128xf32, #tpu.memory_space<vmem>>, vector<1x128xf32>
    tpu.vector_store %arg6[%c0_30, %c0_31], %178 {strides = array<i32>} : memref<1x128xf32, #tpu.memory_space<vmem>>, vector<1x128xf32>,
    return
  }
}

</mosaic_0001>

<llo_original>
// kernel: squeeze.3
$region0: #{squeeze.3}
  %s0 = inlined_call_operand.vmem [shape: f32[6], index: 0, kind: input, shape index: {}]
  %s1 = inlined_call_operand.vmem [shape: f32[3,2], index: 1, kind: output, shape index: {}]
  $region1: #{squeeze.3} parent=0
    #allocation0 [shape = 'u8[4096]{0}', space=vmem, size = 0x1000, scoped, tag = 'scoped mem for output reshape']
    #allocation1 [shape = 'u8[4096]{0}', space=vmem, size = 0x1000, scoped, tag = 'scoped mem for input reshape']
    %s3 = sshll.u32 1, 1
    %s4 = ssub.s32 %s3, 1
    %v5 = vld [vmem:[%s0] sm:%s4]
    %6 = vst [vmem:[#allocation1] sm:%s4] %v5
    %v7 = vld [vmem:[#allocation1] sm:$0x1]
    %vm8 = vcmask 15360
    %9 = vst.msk [vmem:[#allocation0] sm:$0x1] %vm8, %v7
    %v10 = vld [vmem:[#allocation1] sm:$0x1]
    %11 = vrot.lane.b32.xlu0 %v10, 126
    %v12 = vpop.permute.xlu0 %11
    %vm13 = vcmask 15360
    %s14 = scalar_lea.vmem [#allocation0], 1
    %15 = vst.msk [vmem:[%s14] sm:$0x1] %vm13, %v12
    %v16 = vld [vmem:[#allocation1] sm:$0x1]
    %17 = vrot.lane.b32.xlu0 %v16, 124
    %v18 = vpop.permute.xlu0 %17
    %vm19 = vcmask 15360
    %s20 = scalar_lea.vmem [#allocation0], 2
    %21 = vst.msk [vmem:[%s20] sm:$0x1] %vm19, %v18
    %s23 = sshll.u32 1, 4
    %s24 = ssub.s32 %s23, 1
    %v26 = vld [vmem:[#allocation0] sm:%s24]
    %s27 = sshll.u32 1, 4
    %s28 = ssub.s32 %s27, 1
    %29 = vst [vmem:[%s1] sm:%s28] %v26

// kernel: rnn_forward.1
$region0: #{rnn_forward.1}
  #allocation0 [shape = 'u32[]', space=smem, size = 0x4, offset = 0x4, fixed_abs, tag = 'smem constant byte address 0x4 - core index']
  #allocation1 [shape = 'u32[144,128]{1,0:T(1,128)}', space=vmem, size = 0x12000, scoped, tag = 'internal scratch']
  %s0 = inlined_call_operand.vmem [shape: f32[8,32], index: 0, kind: input, shape index: {}]
  %s1 = inlined_call_operand.hbm [shape: f32[32,256], index: 1, kind: input, shape index: {}]
  %s2 = inlined_call_operand.vmem [shape: f32[1,256], index: 2, kind: input, shape index: {}]
  %s3 = inlined_call_operand.hbm [shape: f32[64,256], index: 3, kind: input, shape index: {}]
  %s4 = inlined_call_operand.hbm [shape: f32[64,128], index: 4, kind: input, shape index: {}]
  %s5 = inlined_call_operand.vmem [shape: f32[1,128], index: 5, kind: input, shape index: {}]
  %s6 = inlined_call_operand.vmem [shape: f32[1,128], index: 6, kind: output, shape index: {}]
  %s7 = sld [smem:[#allocation0]]
  $region46: #{rnn_forward.1} parent=0
    _
  %s9 = ssub.s32 1, %s7
  %s10 = scalar_select 0, %s9, %s7
  $region1: #{rnn_forward.1} parent=0
    #allocation2 [shape = 'u8[32768]{0}', space=vmem, size = 0x8000, scoped, tag = 'input window, operand 1, single buffered']
    #allocation3 [shape = 's32[1]{0}', space=sflag, size = 0x4, scoped, tag = 'scoped memory for rnn_forward.1']
    #allocation4 [shape = 'u8[65536]{0}', space=vmem, size = 0x10000, scoped, tag = 'input window, operand 3, single buffered']
    #allocation5 [shape = 's32[1]{0}', space=sflag, size = 0x4, scoped, tag = 'scoped memory for rnn_forward.1']
    #allocation6 [shape = 'u8[32768]{0}', space=vmem, size = 0x8000, scoped, tag = 'input window, operand 4, single buffered']
    %11 = vsyncpa [#allocation3], 0
    %12 = vsyncpa [#allocation5], 0
    // Predicated region
    $region2: #{rnn_forward.1} parent=1 // pred_check
      _
    $region3: #{rnn_forward.1} parent=1 // pred_check_branch
      %14 = sbr.rel (0) target = $region5
    $region4: #{rnn_forward.1} parent=1 // pred_region
      _
    $region5: #{rnn_forward.1} parent=1 // pred_fallthru
      _
    // Predicated region
    $region6: #{rnn_forward.1} parent=1 // pred_check
      _
    $region7: #{rnn_forward.1} parent=1 // pred_check_branch
      %16 = sbr.rel (0) target = $region9
    $region8: #{rnn_forward.1} parent=1 // pred_region
      %s18 = ssub.s32 1024, 1024
      %19 = vsyncadd [#allocation3], %s18
      %s20 = sshll.u32 [#allocation2], 4
      %s21 = int_to_ptr.vmem [resolvable:$true] %s20
      %26 = dma.hbm_to_vmem [thread:$0]  %s1, 1024, %s21, [#allocation3], 256, 256, 16
    $region9: #{rnn_forward.1} parent=1 // pred_fallthru
      _
    // Predicated region
    $region10: #{rnn_forward.1} parent=1 // pred_check
      _
    $region11: #{rnn_forward.1} parent=1 // pred_check_branch
      %28 = sbr.rel (0) target = $region13
    $region12: #{rnn_forward.1} parent=1 // pred_region
      _
    $region13: #{rnn_forward.1} parent=1 // pred_fallthru
      _
    // Predicated region
    $region14: #{rnn_forward.1} parent=1 // pred_check
      _
    $region15: #{rnn_forward.1} parent=1 // pred_check_branch
      %30 = sbr.rel (0) target = $region17
    $region16: #{rnn_forward.1} parent=1 // pred_region
      %s32 = ssub.s32 2048, 2048
      %33 = vsyncadd [#allocation5], %s32
      %s34 = sshll.u32 [#allocation4], 4
      %s35 = int_to_ptr.vmem [resolvable:$true] %s34
      %40 = dma.hbm_to_vmem [thread:$0]  %s3, 2048, %s35, [#allocation5], 256, 256, 16
    $region17: #{rnn_forward.1} parent=1 // pred_fallthru
      _
    // Predicated region
    $region18: #{rnn_forward.1} parent=1 // pred_check
      _
    $region19: #{rnn_forward.1} parent=1 // pred_check_branch
      %42 = sbr.rel (0) target = $region21
    $region20: #{rnn_forward.1} parent=1 // pred_region
      %s44 = ssub.s32 1024, 1024
      %45 = vsyncadd [#allocation5], %s44
      %s46 = sshll.u32 [#allocation6], 4
      %s47 = int_to_ptr.vmem [resolvable:$true] %s46
      %52 = dma.hbm_to_vmem [thread:$0]  %s4, 1024, %s47, [#allocation5], 128, 128, 8
    $region21: #{rnn_forward.1} parent=1 // pred_fallthru
      _
    // Predicated region
    $region22: #{rnn_forward.1} parent=1 // pred_check
      _
    $region23: #{rnn_forward.1} parent=1 // pred_check_branch
      %54 = sbr.rel (0) target = $region25
    $region24: #{rnn_forward.1} parent=1 // pred_region
      _
    $region25: #{rnn_forward.1} parent=1 // pred_fallthru
      _
    // Predicated region
    $region26: #{rnn_forward.1} parent=1 // pred_check
      _
    $region27: #{rnn_forward.1} parent=1 // pred_check_branch
      %56 = sbr.rel (0) target = $region29
    $region28: #{rnn_forward.1} parent=1 // pred_region
      %57 = dma.done [#allocation3], 1024
    $region29: #{rnn_forward.1} parent=1 // pred_fallthru
      _
    // Predicated region
    $region30: #{rnn_forward.1} parent=1 // pred_check
      _
    $region31: #{rnn_forward.1} parent=1 // pred_check_branch
      %59 = sbr.rel (0) target = $region33
    $region32: #{rnn_forward.1} parent=1 // pred_region
      %60 = dma.done [#allocation5], 2048
    $region33: #{rnn_forward.1} parent=1 // pred_fallthru
      _
    // Predicated region
    $region34: #{rnn_forward.1} parent=1 // pred_check
      _
    $region35: #{rnn_forward.1} parent=1 // pred_check_branch
      %62 = sbr.rel (0) target = $region37
    $region36: #{rnn_forward.1} parent=1 // pred_region
      %63 = dma.done [#allocation5], 1024
    $region37: #{rnn_forward.1} parent=1 // pred_fallthru
      _
    %v64 = vld [vmem:[%s0] sm:$0xff]
    %v65 = vld [vmem:[#allocation2] sm:$0xff]
    %v66 = vld [vmem:[#allocation2 + $0x8] sm:$0xff]
    %v67 = vld [vmem:[#allocation2 + $0x10] sm:$0xff]
    %v68 = vld [vmem:[#allocation2 + $0x18] sm:$0xff]
    %v69 = vld [vmem:[#allocation2 + $0x20] sm:$0xff]
    %v70 = vld [vmem:[#allocation2 + $0x28] sm:$0xff]
    %v71 = vld [vmem:[#allocation2 + $0x30] sm:$0xff]
    %v72 = vld [vmem:[#allocation2 + $0x38] sm:$0xff]
    %v73 = vld [vmem:[%s2] sm:$0x3]
    %v75 = vlaneseq
    %v76 = vshrl.u32 %v75, 7
    %v77 = vsub.s32 0, %v76
    %v78 = vrot.slane %v73, %v77
    %v79 = vlaneseq
    %v80 = vshrl.u32 %v79, 7
    %v81 = vsub.s32 1, %v80
    %v82 = vrot.slane %v73, %v81
    %vm85 = vcmask 261120
    %v87 = vsel %vm85, %v64, 0
    %89 = vmatprep.subr.mxu0 0.0
    %90 = vmatpush1.msra.mxu0 0.0
    %91 = vmatprep.subr.mxu0 0.0
    %92 = vmatpush1.msra.mxu0 0.0
    %93 = vmatprep.subr.mxu0 0.0
    %94 = vmatpush1.msra.mxu0 0.0
    %95 = vmatprep.subr.mxu0 0.0
    %96 = vmatpush1.msra.mxu0 0.0
    %97 = vmatprep.subr.mxu0 0.0
    %98 = vmatpush1.msra.mxu0 0.0
    %99 = vmatprep.subr.mxu0 0.0
    %100 = vmatpush1.msra.mxu0 0.0
    %101 = vmatprep.subr.mxu0 0.0
    %102 = vmatpush1.msra.mxu0 0.0
    %103 = vmatprep.subr.mxu0 0.0
    %104 = vmatpush1.msra.mxu0 0.0
    %105 = vmatprep.subr.mxu0 0.0
    %106 = vmatpush1.msra.mxu0 0.0
    %107 = vmatprep.subr.mxu0 0.0
    %108 = vmatpush1.msra.mxu0 0.0
    %109 = vmatprep.subr.mxu0 0.0
    %110 = vmatpush1.msra.mxu0 0.0
    %111 = vmatprep.subr.mxu0 0.0
    %112 = vmatpush1.msra.mxu0 0.0
    %113 = vmatprep.subr.mxu0 %v72
    %114 = vmatpush1.msra.mxu0 %v71
    %115 = vmatprep.subr.mxu0 %v70
    %116 = vmatpush1.msra.mxu0 %v69
    %117 = vmatprep.subr.mxu0 %v68
    %118 = vmatpush1.msra.mxu0 %v67
    %119 = vmatprep.subr.mxu0 %v66
    %120 = vmatpush1.msra.mxu0 %v65
    %121 = vmatprep.subr.mxu0 0.0
    %122 = vmatpush2.msra.mxu0 0.0
    %123 = vmatprep.subr.mxu0 0.0
    %124 = vmatpush2.msra.mxu0 0.0
    %125 = vmatprep.subr.mxu0 0.0
    %126 = vmatpush2.msra.mxu0 0.0
    %127 = vmatprep.subr.mxu0 0.0
    %128 = vmatpush2.msra.mxu0 0.0
    %129 = vmatprep.subr.mxu0 0.0
    %130 = vmatpush2.msra.mxu0 0.0
    %131 = vmatprep.subr.mxu0 0.0
    %132 = vmatpush2.msra.mxu0 0.0
    %133 = vmatprep.subr.mxu0 0.0
    %134 = vmatpush2.msra.mxu0 0.0
    %135 = vmatprep.subr.mxu0 0.0
    %136 = vmatpush2.msra.mxu0 0.0
    %137 = vmatprep.subr.mxu0 0.0
    %138 = vmatpush2.msra.mxu0 0.0
    %139 = vmatprep.subr.mxu0 0.0
    %140 = vmatpush2.msra.mxu0 0.0
    %141 = vmatprep.subr.mxu0 0.0
    %142 = vmatpush2.msra.mxu0 0.0
    %143 = vmatprep.subr.mxu0 0.0
    %144 = vmatpush2.msra.mxu0 0.0
    %145 = vmatprep.subr.mxu0 0.0
    %146 = vmatpush2.msra.mxu0 0.0
    %147 = vmatprep.subr.mxu0 0.0
    %148 = vmatpush2.msra.mxu0 0.0
    %149 = vmatprep.subr.mxu0 0.0
    %150 = vmatpush2.msra.mxu0 0.0
    %151 = vmatprep.subr.mxu0 0.0
    %152 = vmatpush2.msra.mxu0 0.0
    %153 = vmatprep.mubr.f32.mxu0 0.0
    %154 = vmatmul.mubr.f32.gmra.mxu0 %v87
    %v155 = vpop.f32.mrf.mxu0
    %v156 = vadd.f32 %v78, %v155
    %v157 = vpop.f32.mrf.mxu0
    %v158 = vadd.f32 %v82, %v157
    %159 = vdwg.mxu0
    %v160 = vld [vmem:[#allocation4] sm:$0xff]
    %v161 = vld [vmem:[#allocation4 + $0x8] sm:$0xff]
    %v162 = vld [vmem:[#allocation4 + $0x10] sm:$0xff]
    %v163 = vld [vmem:[#allocation4 + $0x18] sm:$0xff]
    %v164 = vld [vmem:[#allocation4 + $0x20] sm:$0xff]
    %v165 = vld [vmem:[#allocation4 + $0x28] sm:$0xff]
    %v166 = vld [vmem:[#allocation4 + $0x30] sm:$0xff]
    %v167 = vld [vmem:[#allocation4 + $0x38] sm:$0xff]
    %v168 = vld [vmem:[#allocation4 + $0x40] sm:$0xff]
    %v169 = vld [vmem:[#allocation4 + $0x48] sm:$0xff]
    %v170 = vld [vmem:[#allocation4 + $0x50] sm:$0xff]
    %v171 = vld [vmem:[#allocation4 + $0x58] sm:$0xff]
    %v172 = vld [vmem:[#allocation4 + $0x60] sm:$0xff]
    %v173 = vld [vmem:[#allocation4 + $0x68] sm:$0xff]
    %v174 = vld [vmem:[#allocation4 + $0x70] sm:$0xff]
    %v175 = vld [vmem:[#allocation4 + $0x78] sm:$0xff]
    %v176 = vlaneseq
    %v177 = vand.u32 %v176, 127
    %vm178 = vcmp.lt.s32.totalorder %v177, 32
    %v179 = vsel %vm178, 1, 0
    %v180 = vcvt.s32.f32 %v179
    %v181 = vxor.u32 %v156, 2147483648
    %v182 = vxor.u32 %v158, 2147483648
    %v183 = vmul.f32 %v181, 1.442695
    %v184 = vpow.pop %v183
    %v185 = vmul.f32 %v182, 1.442695
    %v186 = vpow.pop %v185
    %v187 = vadd.f32 %v184, 1.0
    %v188 = vadd.f32 %v186, 1.0
    %v189 = vrcp.pop %v187
    %v190 = vmul.f32 1.0, %v189
    %v191 = vrcp.pop %v188
    %v192 = vmul.f32 1.0, %v191
    %v193 = vtanh.pop %v158
    %v194 = vmul.f32 %v190, 0.0
    %v195 = vmul.f32 %v190, %v193
    %197 = vrot.lane.b32.xlu0 %v195, 64
    %v198 = vpop.permute.xlu0 %197
    %v200 = vadd.f32 %v194, %v198
    %v201 = vtanh.pop %v200
    %v202 = vmul.f32 %v192, %v201
    %204 = vrot.lane.b32.xlu0 %v180, 64
    %v205 = vpop.permute.xlu0 %204
    %v207 = vmul.f32 %v202, %v205
    %v208 = vmul.f32 %v200, %v205
    %210 = vrot.lane.b32.xlu0 %v207, 64
    %v211 = vpop.permute.xlu0 %210
    %vm212 = vcmask 523264
    %v213 = vsel %vm212, %v211, 0
    %215 = vmatprep.subr.mxu0 0.0
    %216 = vmatpush1.msra.mxu0 0.0
    %217 = vmatprep.subr.mxu0 0.0
    %218 = vmatpush1.msra.mxu0 0.0
    %219 = vmatprep.subr.mxu0 0.0
    %220 = vmatpush1.msra.mxu0 0.0
    %221 = vmatprep.subr.mxu0 0.0
    %222 = vmatpush1.msra.mxu0 0.0
    %223 = vmatprep.subr.mxu0 0.0
    %224 = vmatpush1.msra.mxu0 0.0
    %225 = vmatprep.subr.mxu0 0.0
    %226 = vmatpush1.msra.mxu0 0.0
    %227 = vmatprep.subr.mxu0 0.0
    %228 = vmatpush1.msra.mxu0 0.0
    %229 = vmatprep.subr.mxu0 0.0
    %230 = vmatpush1.msra.mxu0 0.0
    %231 = vmatprep.subr.mxu0 %v175
    %232 = vmatpush1.msra.mxu0 %v174
    %233 = vmatprep.subr.mxu0 %v173
    %234 = vmatpush1.msra.mxu0 %v172
    %235 = vmatprep.subr.mxu0 %v171
    %236 = vmatpush1.msra.mxu0 %v170
    %237 = vmatprep.subr.mxu0 %v169
    %238 = vmatpush1.msra.mxu0 %v168
    %239 = vmatprep.subr.mxu0 %v167
    %240 = vmatpush1.msra.mxu0 %v166
    %241 = vmatprep.subr.mxu0 %v165
    %242 = vmatpush1.msra.mxu0 %v164
    %243 = vmatprep.subr.mxu0 %v163
    %244 = vmatpush1.msra.mxu0 %v162
    %245 = vmatprep.subr.mxu0 %v161
    %246 = vmatpush1.msra.mxu0 %v160
    %247 = vmatprep.subr.mxu0 0.0
    %248 = vmatpush2.msra.mxu0 0.0
    %249 = vmatprep.subr.mxu0 0.0
    %250 = vmatpush2.msra.mxu0 0.0
    %251 = vmatprep.subr.mxu0 0.0
    %252 = vmatpush2.msra.mxu0 0.0
    %253 = vmatprep.subr.mxu0 0.0
    %254 = vmatpush2.msra.mxu0 0.0
    %255 = vmatprep.subr.mxu0 0.0
    %256 = vmatpush2.msra.mxu0 0.0
    %257 = vmatprep.subr.mxu0 0.0
    %258 = vmatpush2.msra.mxu0 0.0
    %259 = vmatprep.subr.mxu0 0.0
    %260 = vmatpush2.msra.mxu0 0.0
    %261 = vmatprep.subr.mxu0 0.0
    %262 = vmatpush2.msra.mxu0 0.0
    %263 = vmatprep.subr.mxu0 0.0
    %264 = vmatpush2.msra.mxu0 0.0
    %265 = vmatprep.subr.mxu0 0.0
    %266 = vmatpush2.msra.mxu0 0.0
    %267 = vmatprep.subr.mxu0 0.0
    %268 = vmatpush2.msra.mxu0 0.0
    %269 = vmatprep.subr.mxu0 0.0
    %270 = vmatpush2.msra.mxu0 0.0
    %271 = vmatprep.subr.mxu0 0.0
    %272 = vmatpush2.msra.mxu0 0.0
    %273 = vmatprep.subr.mxu0 0.0
    %274 = vmatpush2.msra.mxu0 0.0
    %275 = vmatprep.subr.mxu0 0.0
    %276 = vmatpush2.msra.mxu0 0.0
    %277 = vmatprep.subr.mxu0 0.0
    %278 = vmatpush2.msra.mxu0 0.0
    %279 = vmatprep.mubr.f32.mxu0 0.0
    %280 = vmatmul.mubr.f32.gmra.mxu0 %v213
    %v281 = vpop.f32.mrf.mxu0
    %v282 = vadd.f32 0.0, %v281
    %v283 = vpop.f32.mrf.mxu0
    %v284 = vadd.f32 0.0, %v283
    %285 = vdwg.mxu0
    %v288 = vrot.slane %v282, 7
    %v289 = vrot.slane %v284, 7
    %v292 = vadd.f32 %v156, %v288
    %v293 = vadd.f32 %v158, %v289
    %v294 = vxor.u32 %v292, 2147483648
    %v295 = vxor.u32 %v293, 2147483648
    %v296 = vmul.f32 %v294, 1.442695
    %v297 = vpow.pop %v296
    %v298 = vmul.f32 %v295, 1.442695
    %v299 = vpow.pop %v298
    %v300 = vadd.f32 %v297, 1.0
    %v301 = vadd.f32 %v299, 1.0
    %v302 = vrcp.pop %v300
    %v303 = vmul.f32 1.0, %v302
    %v304 = vrcp.pop %v301
    %v305 = vmul.f32 1.0, %v304
    %v306 = vtanh.pop %v293
    %v308 = vrot.slane %v208, 7
    %v310 = vmul.f32 %v303, %v308
    %v311 = vmul.f32 %v303, %v306
    %313 = vrot.lane.b32.xlu0 %v311, 64
    %v314 = vpop.permute.xlu0 %313
    %v316 = vadd.f32 %v310, %v314
    %v317 = vtanh.pop %v316
    %v318 = vmul.f32 %v305, %v317
    %v320 = vrot.slane %v318, 1
    %321 = vrot.lane.b32.xlu0 %v320, 64
    %v322 = vpop.permute.xlu0 %321
    %v323 = vsel %vm212, %v322, 0
    %325 = vmatprep.subr.mxu0 0.0
    %326 = vmatpush1.msra.mxu0 0.0
    %327 = vmatprep.subr.mxu0 0.0
    %328 = vmatpush1.msra.mxu0 0.0
    %329 = vmatprep.subr.mxu0 0.0
    %330 = vmatpush1.msra.mxu0 0.0
    %331 = vmatprep.subr.mxu0 0.0
    %332 = vmatpush1.msra.mxu0 0.0
    %333 = vmatprep.subr.mxu0 0.0
    %334 = vmatpush1.msra.mxu0 0.0
    %335 = vmatprep.subr.mxu0 0.0
    %336 = vmatpush1.msra.mxu0 0.0
    %337 = vmatprep.subr.mxu0 0.0
    %338 = vmatpush1.msra.mxu0 0.0
    %339 = vmatprep.subr.mxu0 0.0
    %340 = vmatpush1.msra.mxu0 0.0
    %341 = vmatprep.subr.mxu0 %v175
    %342 = vmatpush1.msra.mxu0 %v174
    %343 = vmatprep.subr.mxu0 %v173
    %344 = vmatpush1.msra.mxu0 %v172
    %345 = vmatprep.subr.mxu0 %v171
    %346 = vmatpush1.msra.mxu0 %v170
    %347 = vmatprep.subr.mxu0 %v169
    %348 = vmatpush1.msra.mxu0 %v168
    %349 = vmatprep.subr.mxu0 %v167
    %350 = vmatpush1.msra.mxu0 %v166
    %351 = vmatprep.subr.mxu0 %v165
    %352 = vmatpush1.msra.mxu0 %v164
    %353 = vmatprep.subr.mxu0 %v163
    %354 = vmatpush1.msra.mxu0 %v162
    %355 = vmatprep.subr.mxu0 %v161
    %356 = vmatpush1.msra.mxu0 %v160
    %357 = vmatprep.subr.mxu0 0.0
    %358 = vmatpush2.msra.mxu0 0.0
    %359 = vmatprep.subr.mxu0 0.0
    %360 = vmatpush2.msra.mxu0 0.0
    %361 = vmatprep.subr.mxu0 0.0
    %362 = vmatpush2.msra.mxu0 0.0
    %363 = vmatprep.subr.mxu0 0.0
    %364 = vmatpush2.msra.mxu0 0.0
    %365 = vmatprep.subr.mxu0 0.0
    %366 = vmatpush2.msra.mxu0 0.0
    %367 = vmatprep.subr.mxu0 0.0
    %368 = vmatpush2.msra.mxu0 0.0
    %369 = vmatprep.subr.mxu0 0.0
    %370 = vmatpush2.msra.mxu0 0.0
    %371 = vmatprep.subr.mxu0 0.0
    %372 = vmatpush2.msra.mxu0 0.0
    %373 = vmatprep.subr.mxu0 0.0
    %374 = vmatpush2.msra.mxu0 0.0
    %375 = vmatprep.subr.mxu0 0.0
    %376 = vmatpush2.msra.mxu0 0.0
    %377 = vmatprep.subr.mxu0 0.0
    %378 = vmatpush2.msra.mxu0 0.0
    %379 = vmatprep.subr.mxu0 0.0
    %380 = vmatpush2.msra.mxu0 0.0
    %381 = vmatprep.subr.mxu0 0.0
    %382 = vmatpush2.msra.mxu0 0.0
    %383 = vmatprep.subr.mxu0 0.0
    %384 = vmatpush2.msra.mxu0 0.0
    %385 = vmatprep.subr.mxu0 0.0
    %386 = vmatpush2.msra.mxu0 0.0
    %387 = vmatprep.subr.mxu0 0.0
    %388 = vmatpush2.msra.mxu0 0.0
    %389 = vmatprep.mubr.f32.mxu0 0.0
    %390 = vmatmul.mubr.f32.gmra.mxu0 %v323
    %v391 = vpop.f32.mrf.mxu0
    %v392 = vadd.f32 0.0, %v391
    %v393 = vpop.f32.mrf.mxu0
    %v394 = vadd.f32 0.0, %v393
    %395 = vdwg.mxu0
    %v398 = vrot.slane %v392, 6
    %v399 = vrot.slane %v394, 6
    %v402 = vadd.f32 %v156, %v398
    %v403 = vadd.f32 %v158, %v399
    %v404 = vxor.u32 %v402, 2147483648
    %v405 = vxor.u32 %v403, 2147483648
    %v406 = vmul.f32 %v404, 1.442695
    %v407 = vpow.pop %v406
    %v408 = vmul.f32 %v405, 1.442695
    %v409 = vpow.pop %v408
    %v410 = vadd.f32 %v407, 1.0
    %v411 = vadd.f32 %v409, 1.0
    %v412 = vrcp.pop %v410
    %v413 = vmul.f32 1.0, %v412
    %v414 = vrcp.pop %v411
    %v415 = vmul.f32 1.0, %v414
    %v416 = vtanh.pop %v403
    %v418 = vrot.slane %v316, 7
    %v420 = vmul.f32 %v413, %v418
    %v421 = vmul.f32 %v413, %v416
    %423 = vrot.lane.b32.xlu0 %v421, 64
    %v424 = vpop.permute.xlu0 %423
    %v426 = vadd.f32 %v420, %v424
    %v427 = vtanh.pop %v426
    %v428 = vmul.f32 %v415, %v427
    %v430 = vrot.slane %v428, 2
    %431 = vrot.lane.b32.xlu0 %v430, 64
    %v432 = vpop.permute.xlu0 %431
    %v433 = vsel %vm212, %v432, 0
    %435 = vmatprep.subr.mxu0 0.0
    %436 = vmatpush1.msra.mxu0 0.0
    %437 = vmatprep.subr.mxu0 0.0
    %438 = vmatpush1.msra.mxu0 0.0
    %439 = vmatprep.subr.mxu0 0.0
    %440 = vmatpush1.msra.mxu0 0.0
    %441 = vmatprep.subr.mxu0 0.0
    %442 = vmatpush1.msra.mxu0 0.0
    %443 = vmatprep.subr.mxu0 0.0
    %444 = vmatpush1.msra.mxu0 0.0
    %445 = vmatprep.subr.mxu0 0.0
    %446 = vmatpush1.msra.mxu0 0.0
    %447 = vmatprep.subr.mxu0 0.0
    %448 = vmatpush1.msra.mxu0 0.0
    %449 = vmatprep.subr.mxu0 0.0
    %450 = vmatpush1.msra.mxu0 0.0
    %451 = vmatprep.subr.mxu0 %v175
    %452 = vmatpush1.msra.mxu0 %v174
    %453 = vmatprep.subr.mxu0 %v173
    %454 = vmatpush1.msra.mxu0 %v172
    %455 = vmatprep.subr.mxu0 %v171
    %456 = vmatpush1.msra.mxu0 %v170
    %457 = vmatprep.subr.mxu0 %v169
    %458 = vmatpush1.msra.mxu0 %v168
    %459 = vmatprep.subr.mxu0 %v167
    %460 = vmatpush1.msra.mxu0 %v166
    %461 = vmatprep.subr.mxu0 %v165
    %462 = vmatpush1.msra.mxu0 %v164
    %463 = vmatprep.subr.mxu0 %v163
    %464 = vmatpush1.msra.mxu0 %v162
    %465 = vmatprep.subr.mxu0 %v161
    %466 = vmatpush1.msra.mxu0 %v160
    %467 = vmatprep.subr.mxu0 0.0
    %468 = vmatpush2.msra.mxu0 0.0
    %469 = vmatprep.subr.mxu0 0.0
    %470 = vmatpush2.msra.mxu0 0.0
    %471 = vmatprep.subr.mxu0 0.0
    %472 = vmatpush2.msra.mxu0 0.0
    %473 = vmatprep.subr.mxu0 0.0
    %474 = vmatpush2.msra.mxu0 0.0
    %475 = vmatprep.subr.mxu0 0.0
    %476 = vmatpush2.msra.mxu0 0.0
    %477 = vmatprep.subr.mxu0 0.0
    %478 = vmatpush2.msra.mxu0 0.0
    %479 = vmatprep.subr.mxu0 0.0
    %480 = vmatpush2.msra.mxu0 0.0
    %481 = vmatprep.subr.mxu0 0.0
    %482 = vmatpush2.msra.mxu0 0.0
    %483 = vmatprep.subr.mxu0 0.0
    %484 = vmatpush2.msra.mxu0 0.0
    %485 = vmatprep.subr.mxu0 0.0
    %486 = vmatpush2.msra.mxu0 0.0
    %487 = vmatprep.subr.mxu0 0.0
    %488 = vmatpush2.msra.mxu0 0.0
    %489 = vmatprep.subr.mxu0 0.0
    %490 = vmatpush2.msra.mxu0 0.0
    %491 = vmatprep.subr.mxu0 0.0
    %492 = vmatpush2.msra.mxu0 0.0
    %493 = vmatprep.subr.mxu0 0.0
    %494 = vmatpush2.msra.mxu0 0.0
    %495 = vmatprep.subr.mxu0 0.0
    %496 = vmatpush2.msra.mxu0 0.0
    %497 = vmatprep.subr.mxu0 0.0
    %498 = vmatpush2.msra.mxu0 0.0
    %499 = vmatprep.mubr.f32.mxu0 0.0
    %500 = vmatmul.mubr.f32.gmra.mxu0 %v433
    %v501 = vpop.f32.mrf.mxu0
    %v502 = vadd.f32 0.0, %v501
    %v503 = vpop.f32.mrf.mxu0
    %v504 = vadd.f32 0.0, %v503
    %505 = vdwg.mxu0
    %v508 = vrot.slane %v502, 5
    %v509 = vrot.slane %v504, 5
    %v512 = vadd.f32 %v156, %v508
    %v513 = vadd.f32 %v158, %v509
    %v514 = vxor.u32 %v512, 2147483648
    %v515 = vxor.u32 %v513, 2147483648
    %v516 = vmul.f32 %v514, 1.442695
    %v517 = vpow.pop %v516
    %v518 = vmul.f32 %v515, 1.442695
    %v519 = vpow.pop %v518
    %v520 = vadd.f32 %v517, 1.0
    %v521 = vadd.f32 %v519, 1.0
    %v522 = vrcp.pop %v520
    %v523 = vmul.f32 1.0, %v522
    %v524 = vrcp.pop %v521
    %v525 = vmul.f32 1.0, %v524
    %v526 = vtanh.pop %v513
    %v528 = vrot.slane %v426, 7
    %v530 = vmul.f32 %v523, %v528
    %v531 = vmul.f32 %v523, %v526
    %533 = vrot.lane.b32.xlu0 %v531, 64
    %v534 = vpop.permute.xlu0 %533
    %v536 = vadd.f32 %v530, %v534
    %v537 = vtanh.pop %v536
    %v538 = vmul.f32 %v525, %v537
    %v540 = vrot.slane %v538, 3
    %541 = vrot.lane.b32.xlu0 %v540, 64
    %v542 = vpop.permute.xlu0 %541
    %v543 = vsel %vm212, %v542, 0
    %545 = vmatprep.subr.mxu0 0.0
    %546 = vmatpush1.msra.mxu0 0.0
    %547 = vmatprep.subr.mxu0 0.0
    %548 = vmatpush1.msra.mxu0 0.0
    %549 = vmatprep.subr.mxu0 0.0
    %550 = vmatpush1.msra.mxu0 0.0
    %551 = vmatprep.subr.mxu0 0.0
    %552 = vmatpush1.msra.mxu0 0.0
    %553 = vmatprep.subr.mxu0 0.0
    %554 = vmatpush1.msra.mxu0 0.0
    %555 = vmatprep.subr.mxu0 0.0
    %556 = vmatpush1.msra.mxu0 0.0
    %557 = vmatprep.subr.mxu0 0.0
    %558 = vmatpush1.msra.mxu0 0.0
    %559 = vmatprep.subr.mxu0 0.0
    %560 = vmatpush1.msra.mxu0 0.0
    %561 = vmatprep.subr.mxu0 %v175
    %562 = vmatpush1.msra.mxu0 %v174
    %563 = vmatprep.subr.mxu0 %v173
    %564 = vmatpush1.msra.mxu0 %v172
    %565 = vmatprep.subr.mxu0 %v171
    %566 = vmatpush1.msra.mxu0 %v170
    %567 = vmatprep.subr.mxu0 %v169
    %568 = vmatpush1.msra.mxu0 %v168
    %569 = vmatprep.subr.mxu0 %v167
    %570 = vmatpush1.msra.mxu0 %v166
    %571 = vmatprep.subr.mxu0 %v165
    %572 = vmatpush1.msra.mxu0 %v164
    %573 = vmatprep.subr.mxu0 %v163
    %574 = vmatpush1.msra.mxu0 %v162
    %575 = vmatprep.subr.mxu0 %v161
    %576 = vmatpush1.msra.mxu0 %v160
    %577 = vmatprep.subr.mxu0 0.0
    %578 = vmatpush2.msra.mxu0 0.0
    %579 = vmatprep.subr.mxu0 0.0
    %580 = vmatpush2.msra.mxu0 0.0
    %581 = vmatprep.subr.mxu0 0.0
    %582 = vmatpush2.msra.mxu0 0.0
    %583 = vmatprep.subr.mxu0 0.0
    %584 = vmatpush2.msra.mxu0 0.0
    %585 = vmatprep.subr.mxu0 0.0
    %586 = vmatpush2.msra.mxu0 0.0
    %587 = vmatprep.subr.mxu0 0.0
    %588 = vmatpush2.msra.mxu0 0.0
    %589 = vmatprep.subr.mxu0 0.0
    %590 = vmatpush2.msra.mxu0 0.0
    %591 = vmatprep.subr.mxu0 0.0
    %592 = vmatpush2.msra.mxu0 0.0
    %593 = vmatprep.subr.mxu0 0.0
    %594 = vmatpush2.msra.mxu0 0.0
    %595 = vmatprep.subr.mxu0 0.0
    %596 = vmatpush2.msra.mxu0 0.0
    %597 = vmatprep.subr.mxu0 0.0
    %598 = vmatpush2.msra.mxu0 0.0
    %599 = vmatprep.subr.mxu0 0.0
    %600 = vmatpush2.msra.mxu0 0.0
    %601 = vmatprep.subr.mxu0 0.0
    %602 = vmatpush2.msra.mxu0 0.0
    %603 = vmatprep.subr.mxu0 0.0
    %604 = vmatpush2.msra.mxu0 0.0
    %605 = vmatprep.subr.mxu0 0.0
    %606 = vmatpush2.msra.mxu0 0.0
    %607 = vmatprep.subr.mxu0 0.0
    %608 = vmatpush2.msra.mxu0 0.0
    %609 = vmatprep.mubr.f32.mxu0 0.0
    %610 = vmatmul.mubr.f32.gmra.mxu0 %v543
    %v611 = vpop.f32.mrf.mxu0
    %v612 = vadd.f32 0.0, %v611
    %v613 = vpop.f32.mrf.mxu0
    %v614 = vadd.f32 0.0, %v613
    %615 = vdwg.mxu0
    %v618 = vrot.slane %v612, 4
    %v619 = vrot.slane %v614, 4
    %v622 = vadd.f32 %v156, %v618
    %v623 = vadd.f32 %v158, %v619
    %v624 = vxor.u32 %v622, 2147483648
    %v625 = vxor.u32 %v623, 2147483648
    %v626 = vmul.f32 %v624, 1.442695
    %v627 = vpow.pop %v626
    %v628 = vmul.f32 %v625, 1.442695
    %v629 = vpow.pop %v628
    %v630 = vadd.f32 %v627, 1.0
    %v631 = vadd.f32 %v629, 1.0
    %v632 = vrcp.pop %v630
    %v633 = vmul.f32 1.0, %v632
    %v634 = vrcp.pop %v631
    %v635 = vmul.f32 1.0, %v634
    %v636 = vtanh.pop %v623
    %v638 = vrot.slane %v536, 7
    %v640 = vmul.f32 %v633, %v638
    %v641 = vmul.f32 %v633, %v636
    %643 = vrot.lane.b32.xlu0 %v641, 64
    %v644 = vpop.permute.xlu0 %643
    %v646 = vadd.f32 %v640, %v644
    %v647 = vtanh.pop %v646
    %v648 = vmul.f32 %v635, %v647
    %v650 = vrot.slane %v648, 4
    %651 = vrot.lane.b32.xlu0 %v650, 64
    %v652 = vpop.permute.xlu0 %651
    %v653 = vsel %vm212, %v652, 0
    %655 = vmatprep.subr.mxu0 0.0
    %656 = vmatpush1.msra.mxu0 0.0
    %657 = vmatprep.subr.mxu0 0.0
    %658 = vmatpush1.msra.mxu0 0.0
    %659 = vmatprep.subr.mxu0 0.0
    %660 = vmatpush1.msra.mxu0 0.0
    %661 = vmatprep.subr.mxu0 0.0
    %662 = vmatpush1.msra.mxu0 0.0
    %663 = vmatprep.subr.mxu0 0.0
    %664 = vmatpush1.msra.mxu0 0.0
    %665 = vmatprep.subr.mxu0 0.0
    %666 = vmatpush1.msra.mxu0 0.0
    %667 = vmatprep.subr.mxu0 0.0
    %668 = vmatpush1.msra.mxu0 0.0
    %669 = vmatprep.subr.mxu0 0.0
    %670 = vmatpush1.msra.mxu0 0.0
    %671 = vmatprep.subr.mxu0 %v175
    %672 = vmatpush1.msra.mxu0 %v174
    %673 = vmatprep.subr.mxu0 %v173
    %674 = vmatpush1.msra.mxu0 %v172
    %675 = vmatprep.subr.mxu0 %v171
    %676 = vmatpush1.msra.mxu0 %v170
    %677 = vmatprep.subr.mxu0 %v169
    %678 = vmatpush1.msra.mxu0 %v168
    %679 = vmatprep.subr.mxu0 %v167
    %680 = vmatpush1.msra.mxu0 %v166
    %681 = vmatprep.subr.mxu0 %v165
    %682 = vmatpush1.msra.mxu0 %v164
    %683 = vmatprep.subr.mxu0 %v163
    %684 = vmatpush1.msra.mxu0 %v162
    %685 = vmatprep.subr.mxu0 %v161
    %686 = vmatpush1.msra.mxu0 %v160
    %687 = vmatprep.subr.mxu0 0.0
    %688 = vmatpush2.msra.mxu0 0.0
    %689 = vmatprep.subr.mxu0 0.0
    %690 = vmatpush2.msra.mxu0 0.0
    %691 = vmatprep.subr.mxu0 0.0
    %692 = vmatpush2.msra.mxu0 0.0
    %693 = vmatprep.subr.mxu0 0.0
    %694 = vmatpush2.msra.mxu0 0.0
    %695 = vmatprep.subr.mxu0 0.0
    %696 = vmatpush2.msra.mxu0 0.0
    %697 = vmatprep.subr.mxu0 0.0
    %698 = vmatpush2.msra.mxu0 0.0
    %699 = vmatprep.subr.mxu0 0.0
    %700 = vmatpush2.msra.mxu0 0.0
    %701 = vmatprep.subr.mxu0 0.0
    %702 = vmatpush2.msra.mxu0 0.0
    %703 = vmatprep.subr.mxu0 0.0
    %704 = vmatpush2.msra.mxu0 0.0
    %705 = vmatprep.subr.mxu0 0.0
    %706 = vmatpush2.msra.mxu0 0.0
    %707 = vmatprep.subr.mxu0 0.0
    %708 = vmatpush2.msra.mxu0 0.0
    %709 = vmatprep.subr.mxu0 0.0
    %710 = vmatpush2.msra.mxu0 0.0
    %711 = vmatprep.subr.mxu0 0.0
    %712 = vmatpush2.msra.mxu0 0.0
    %713 = vmatprep.subr.mxu0 0.0
    %714 = vmatpush2.msra.mxu0 0.0
    %715 = vmatprep.subr.mxu0 0.0
    %716 = vmatpush2.msra.mxu0 0.0
    %717 = vmatprep.subr.mxu0 0.0
    %718 = vmatpush2.msra.mxu0 0.0
    %719 = vmatprep.mubr.f32.mxu0 0.0
    %720 = vmatmul.mubr.f32.gmra.mxu0 %v653
    %v721 = vpop.f32.mrf.mxu0
    %v722 = vadd.f32 0.0, %v721
    %v723 = vpop.f32.mrf.mxu0
    %v724 = vadd.f32 0.0, %v723
    %725 = vdwg.mxu0
    %v728 = vrot.slane %v722, 3
    %v729 = vrot.slane %v724, 3
    %v732 = vadd.f32 %v156, %v728
    %v733 = vadd.f32 %v158, %v729
    %v734 = vxor.u32 %v732, 2147483648
    %v735 = vxor.u32 %v733, 2147483648
    %v736 = vmul.f32 %v734, 1.442695
    %v737 = vpow.pop %v736
    %v738 = vmul.f32 %v735, 1.442695
    %v739 = vpow.pop %v738
    %v740 = vadd.f32 %v737, 1.0
    %v741 = vadd.f32 %v739, 1.0
    %v742 = vrcp.pop %v740
    %v743 = vmul.f32 1.0, %v742
    %v744 = vrcp.pop %v741
    %v745 = vmul.f32 1.0, %v744
    %v746 = vtanh.pop %v733
    %v748 = vrot.slane %v646, 7
    %v750 = vmul.f32 %v743, %v748
    %v751 = vmul.f32 %v743, %v746
    %753 = vrot.lane.b32.xlu0 %v751, 64
    %v754 = vpop.permute.xlu0 %753
    %v756 = vadd.f32 %v750, %v754
    %v757 = vtanh.pop %v756
    %v758 = vmul.f32 %v745, %v757
    %v760 = vrot.slane %v758, 5
    %761 = vrot.lane.b32.xlu0 %v760, 64
    %v762 = vpop.permute.xlu0 %761
    %v763 = vsel %vm212, %v762, 0
    %765 = vmatprep.subr.mxu0 0.0
    %766 = vmatpush1.msra.mxu0 0.0
    %767 = vmatprep.subr.mxu0 0.0
    %768 = vmatpush1.msra.mxu0 0.0
    %769 = vmatprep.subr.mxu0 0.0
    %770 = vmatpush1.msra.mxu0 0.0
    %771 = vmatprep.subr.mxu0 0.0
    %772 = vmatpush1.msra.mxu0 0.0
    %773 = vmatprep.subr.mxu0 0.0
    %774 = vmatpush1.msra.mxu0 0.0
    %775 = vmatprep.subr.mxu0 0.0
    %776 = vmatpush1.msra.mxu0 0.0
    %777 = vmatprep.subr.mxu0 0.0
    %778 = vmatpush1.msra.mxu0 0.0
    %779 = vmatprep.subr.mxu0 0.0
    %780 = vmatpush1.msra.mxu0 0.0
    %781 = vmatprep.subr.mxu0 %v175
    %782 = vmatpush1.msra.mxu0 %v174
    %783 = vmatprep.subr.mxu0 %v173
    %784 = vmatpush1.msra.mxu0 %v172
    %785 = vmatprep.subr.mxu0 %v171
    %786 = vmatpush1.msra.mxu0 %v170
    %787 = vmatprep.subr.mxu0 %v169
    %788 = vmatpush1.msra.mxu0 %v168
    %789 = vmatprep.subr.mxu0 %v167
    %790 = vmatpush1.msra.mxu0 %v166
    %791 = vmatprep.subr.mxu0 %v165
    %792 = vmatpush1.msra.mxu0 %v164
    %793 = vmatprep.subr.mxu0 %v163
    %794 = vmatpush1.msra.mxu0 %v162
    %795 = vmatprep.subr.mxu0 %v161
    %796 = vmatpush1.msra.mxu0 %v160
    %797 = vmatprep.subr.mxu0 0.0
    %798 = vmatpush2.msra.mxu0 0.0
    %799 = vmatprep.subr.mxu0 0.0
    %800 = vmatpush2.msra.mxu0 0.0
    %801 = vmatprep.subr.mxu0 0.0
    %802 = vmatpush2.msra.mxu0 0.0
    %803 = vmatprep.subr.mxu0 0.0
    %804 = vmatpush2.msra.mxu0 0.0
    %805 = vmatprep.subr.mxu0 0.0
    %806 = vmatpush2.msra.mxu0 0.0
    %807 = vmatprep.subr.mxu0 0.0
    %808 = vmatpush2.msra.mxu0 0.0
    %809 = vmatprep.subr.mxu0 0.0
    %810 = vmatpush2.msra.mxu0 0.0
    %811 = vmatprep.subr.mxu0 0.0
    %812 = vmatpush2.msra.mxu0 0.0
    %813 = vmatprep.subr.mxu0 0.0
    %814 = vmatpush2.msra.mxu0 0.0
    %815 = vmatprep.subr.mxu0 0.0
    %816 = vmatpush2.msra.mxu0 0.0
    %817 = vmatprep.subr.mxu0 0.0
    %818 = vmatpush2.msra.mxu0 0.0
    %819 = vmatprep.subr.mxu0 0.0
    %820 = vmatpush2.msra.mxu0 0.0
    %821 = vmatprep.subr.mxu0 0.0
    %822 = vmatpush2.msra.mxu0 0.0
    %823 = vmatprep.subr.mxu0 0.0
    %824 = vmatpush2.msra.mxu0 0.0
    %825 = vmatprep.subr.mxu0 0.0
    %826 = vmatpush2.msra.mxu0 0.0
    %827 = vmatprep.subr.mxu0 0.0
    %828 = vmatpush2.msra.mxu0 0.0
    %829 = vmatprep.mubr.f32.mxu0 0.0
    %830 = vmatmul.mubr.f32.gmra.mxu0 %v763
    %v831 = vpop.f32.mrf.mxu0
    %v832 = vadd.f32 0.0, %v831
    %v833 = vpop.f32.mrf.mxu0
    %v834 = vadd.f32 0.0, %v833
    %835 = vdwg.mxu0
    %v838 = vrot.slane %v832, 2
    %v839 = vrot.slane %v834, 2
    %v842 = vadd.f32 %v156, %v838
    %v843 = vadd.f32 %v158, %v839
    %v844 = vxor.u32 %v842, 2147483648
    %v845 = vxor.u32 %v843, 2147483648
    %v846 = vmul.f32 %v844, 1.442695
    %v847 = vpow.pop %v846
    %v848 = vmul.f32 %v845, 1.442695
    %v849 = vpow.pop %v848
    %v850 = vadd.f32 %v847, 1.0
    %v851 = vadd.f32 %v849, 1.0
    %v852 = vrcp.pop %v850
    %v853 = vmul.f32 1.0, %v852
    %v854 = vrcp.pop %v851
    %v855 = vmul.f32 1.0, %v854
    %v856 = vtanh.pop %v843
    %v858 = vrot.slane %v756, 7
    %v860 = vmul.f32 %v853, %v858
    %v861 = vmul.f32 %v853, %v856
    %863 = vrot.lane.b32.xlu0 %v861, 64
    %v864 = vpop.permute.xlu0 %863
    %v866 = vadd.f32 %v860, %v864
    %v867 = vtanh.pop %v866
    %v868 = vmul.f32 %v855, %v867
    %v870 = vrot.slane %v868, 6
    %871 = vrot.lane.b32.xlu0 %v870, 64
    %v872 = vpop.permute.xlu0 %871
    %v873 = vsel %vm212, %v872, 0
    %875 = vmatprep.subr.mxu0 0.0
    %876 = vmatpush1.msra.mxu0 0.0
    %877 = vmatprep.subr.mxu0 0.0
    %878 = vmatpush1.msra.mxu0 0.0
    %879 = vmatprep.subr.mxu0 0.0
    %880 = vmatpush1.msra.mxu0 0.0
    %881 = vmatprep.subr.mxu0 0.0
    %882 = vmatpush1.msra.mxu0 0.0
    %883 = vmatprep.subr.mxu0 0.0
    %884 = vmatpush1.msra.mxu0 0.0
    %885 = vmatprep.subr.mxu0 0.0
    %886 = vmatpush1.msra.mxu0 0.0
    %887 = vmatprep.subr.mxu0 0.0
    %888 = vmatpush1.msra.mxu0 0.0
    %889 = vmatprep.subr.mxu0 0.0
    %890 = vmatpush1.msra.mxu0 0.0
    %891 = vmatprep.subr.mxu0 %v175
    %892 = vmatpush1.msra.mxu0 %v174
    %893 = vmatprep.subr.mxu0 %v173
    %894 = vmatpush1.msra.mxu0 %v172
    %895 = vmatprep.subr.mxu0 %v171
    %896 = vmatpush1.msra.mxu0 %v170
    %897 = vmatprep.subr.mxu0 %v169
    %898 = vmatpush1.msra.mxu0 %v168
    %899 = vmatprep.subr.mxu0 %v167
    %900 = vmatpush1.msra.mxu0 %v166
    %901 = vmatprep.subr.mxu0 %v165
    %902 = vmatpush1.msra.mxu0 %v164
    %903 = vmatprep.subr.mxu0 %v163
    %904 = vmatpush1.msra.mxu0 %v162
    %905 = vmatprep.subr.mxu0 %v161
    %906 = vmatpush1.msra.mxu0 %v160
    %907 = vmatprep.subr.mxu0 0.0
    %908 = vmatpush2.msra.mxu0 0.0
    %909 = vmatprep.subr.mxu0 0.0
    %910 = vmatpush2.msra.mxu0 0.0
    %911 = vmatprep.subr.mxu0 0.0
    %912 = vmatpush2.msra.mxu0 0.0
    %913 = vmatprep.subr.mxu0 0.0
    %914 = vmatpush2.msra.mxu0 0.0
    %915 = vmatprep.subr.mxu0 0.0
    %916 = vmatpush2.msra.mxu0 0.0
    %917 = vmatprep.subr.mxu0 0.0
    %918 = vmatpush2.msra.mxu0 0.0
    %919 = vmatprep.subr.mxu0 0.0
    %920 = vmatpush2.msra.mxu0 0.0
    %921 = vmatprep.subr.mxu0 0.0
    %922 = vmatpush2.msra.mxu0 0.0
    %923 = vmatprep.subr.mxu0 0.0
    %924 = vmatpush2.msra.mxu0 0.0
    %925 = vmatprep.subr.mxu0 0.0
    %926 = vmatpush2.msra.mxu0 0.0
    %927 = vmatprep.subr.mxu0 0.0
    %928 = vmatpush2.msra.mxu0 0.0
    %929 = vmatprep.subr.mxu0 0.0
    %930 = vmatpush2.msra.mxu0 0.0
    %931 = vmatprep.subr.mxu0 0.0
    %932 = vmatpush2.msra.mxu0 0.0
    %933 = vmatprep.subr.mxu0 0.0
    %934 = vmatpush2.msra.mxu0 0.0
    %935 = vmatprep.subr.mxu0 0.0
    %936 = vmatpush2.msra.mxu0 0.0
    %937 = vmatprep.subr.mxu0 0.0
    %938 = vmatpush2.msra.mxu0 0.0
    %939 = vmatprep.mubr.f32.mxu0 0.0
    %940 = vmatmul.mubr.f32.gmra.mxu0 %v873
    %v941 = vpop.f32.mrf.mxu0
    %v942 = vadd.f32 0.0, %v941
    %v943 = vpop.f32.mrf.mxu0
    %v944 = vadd.f32 0.0, %v943
    %945 = vdwg.mxu0
    %v948 = vrot.slane %v942, 1
    %v949 = vrot.slane %v944, 1
    %v952 = vadd.f32 %v156, %v948
    %v953 = vadd.f32 %v158, %v949
    %v954 = vxor.u32 %v952, 2147483648
    %v955 = vxor.u32 %v953, 2147483648
    %v956 = vmul.f32 %v954, 1.442695
    %v957 = vpow.pop %v956
    %v958 = vmul.f32 %v955, 1.442695
    %v959 = vpow.pop %v958
    %v960 = vadd.f32 %v957, 1.0
    %v961 = vadd.f32 %v959, 1.0
    %v962 = vrcp.pop %v960
    %v963 = vmul.f32 1.0, %v962
    %v964 = vrcp.pop %v961
    %v965 = vmul.f32 1.0, %v964
    %v966 = vtanh.pop %v953
    %v968 = vrot.slane %v866, 7
    %v970 = vmul.f32 %v963, %v968
    %v971 = vmul.f32 %v963, %v966
    %973 = vrot.lane.b32.xlu0 %v971, 64
    %v974 = vpop.permute.xlu0 %973
    %v976 = vadd.f32 %v970, %v974
    %v977 = vtanh.pop %v976
    %v978 = vmul.f32 %v965, %v977
    %v980 = vrot.slane %v978, 7
    %981 = vrot.lane.b32.xlu0 %v980, 64
    %v982 = vpop.permute.xlu0 %981
    %v983 = vsel %vm212, %v982, 0
    %985 = vmatprep.subr.mxu0 0.0
    %986 = vmatpush1.msra.mxu0 0.0
    %987 = vmatprep.subr.mxu0 0.0
    %988 = vmatpush1.msra.mxu0 0.0
    %989 = vmatprep.subr.mxu0 0.0
    %990 = vmatpush1.msra.mxu0 0.0
    %991 = vmatprep.subr.mxu0 0.0
    %992 = vmatpush1.msra.mxu0 0.0
    %993 = vmatprep.subr.mxu0 0.0
    %994 = vmatpush1.msra.mxu0 0.0
    %995 = vmatprep.subr.mxu0 0.0
    %996 = vmatpush1.msra.mxu0 0.0
    %997 = vmatprep.subr.mxu0 0.0
    %998 = vmatpush1.msra.mxu0 0.0
    %999 = vmatprep.subr.mxu0 0.0
    %1000 = vmatpush1.msra.mxu0 0.0
    %1001 = vmatprep.subr.mxu0 %v175
    %1002 = vmatpush1.msra.mxu0 %v174
    %1003 = vmatprep.subr.mxu0 %v173
    %1004 = vmatpush1.msra.mxu0 %v172
    %1005 = vmatprep.subr.mxu0 %v171
    %1006 = vmatpush1.msra.mxu0 %v170
    %1007 = vmatprep.subr.mxu0 %v169
    %1008 = vmatpush1.msra.mxu0 %v168
    %1009 = vmatprep.subr.mxu0 %v167
    %1010 = vmatpush1.msra.mxu0 %v166
    %1011 = vmatprep.subr.mxu0 %v165
    %1012 = vmatpush1.msra.mxu0 %v164
    %1013 = vmatprep.subr.mxu0 %v163
    %1014 = vmatpush1.msra.mxu0 %v162
    %1015 = vmatprep.subr.mxu0 %v161
    %1016 = vmatpush1.msra.mxu0 %v160
    %1017 = vmatprep.subr.mxu0 0.0
    %1018 = vmatpush2.msra.mxu0 0.0
    %1019 = vmatprep.subr.mxu0 0.0
    %1020 = vmatpush2.msra.mxu0 0.0
    %1021 = vmatprep.subr.mxu0 0.0
    %1022 = vmatpush2.msra.mxu0 0.0
    %1023 = vmatprep.subr.mxu0 0.0
    %1024 = vmatpush2.msra.mxu0 0.0
    %1025 = vmatprep.subr.mxu0 0.0
    %1026 = vmatpush2.msra.mxu0 0.0
    %1027 = vmatprep.subr.mxu0 0.0
    %1028 = vmatpush2.msra.mxu0 0.0
    %1029 = vmatprep.subr.mxu0 0.0
    %1030 = vmatpush2.msra.mxu0 0.0
    %1031 = vmatprep.subr.mxu0 0.0
    %1032 = vmatpush2.msra.mxu0 0.0
    %1033 = vmatprep.subr.mxu0 0.0
    %1034 = vmatpush2.msra.mxu0 0.0
    %1035 = vmatprep.subr.mxu0 0.0
    %1036 = vmatpush2.msra.mxu0 0.0
    %1037 = vmatprep.subr.mxu0 0.0
    %1038 = vmatpush2.msra.mxu0 0.0
    %1039 = vmatprep.subr.mxu0 0.0
    %1040 = vmatpush2.msra.mxu0 0.0
    %1041 = vmatprep.subr.mxu0 0.0
    %1042 = vmatpush2.msra.mxu0 0.0
    %1043 = vmatprep.subr.mxu0 0.0
    %1044 = vmatpush2.msra.mxu0 0.0
    %1045 = vmatprep.subr.mxu0 0.0
    %1046 = vmatpush2.msra.mxu0 0.0
    %1047 = vmatprep.subr.mxu0 0.0
    %1048 = vmatpush2.msra.mxu0 0.0
    %1049 = vmatprep.mubr.f32.mxu0 0.0
    %1050 = vmatmul.mubr.f32.gmra.mxu0 %v983
    %v1051 = vpop.f32.mrf.mxu0
    %v1052 = vadd.f32 0.0, %v1051
    %v1053 = vpop.f32.mrf.mxu0
    %v1054 = vadd.f32 0.0, %v1053
    %1055 = vdwg.mxu0
    %v1058 = vrot.slane %v1052, 1
    %v1059 = vrot.slane %v1054, 1
    %v1062 = vadd.f32 %v156, %v1058
    %v1063 = vadd.f32 %v158, %v1059
    %v1064 = vxor.u32 %v1062, 2147483648
    %v1065 = vxor.u32 %v1063, 2147483648
    %v1066 = vmul.f32 %v1064, 1.442695
    %v1067 = vpow.pop %v1066
    %v1068 = vmul.f32 %v1065, 1.442695
    %v1069 = vpow.pop %v1068
    %v1070 = vadd.f32 %v1067, 1.0
    %v1071 = vadd.f32 %v1069, 1.0
    %v1072 = vrcp.pop %v1070
    %v1073 = vmul.f32 1.0, %v1072
    %v1074 = vrcp.pop %v1071
    %v1075 = vmul.f32 1.0, %v1074
    %v1076 = vtanh.pop %v1063
    %v1077 = vmul.f32 %v1073, %v976
    %v1078 = vmul.f32 %v1073, %v1076
    %1080 = vrot.lane.b32.xlu0 %v1078, 64
    %v1081 = vpop.permute.xlu0 %1080
    %v1083 = vadd.f32 %v1077, %v1081
    %v1084 = vtanh.pop %v1083
    %v1085 = vmul.f32 %v1075, %v1084
    %v1086 = vld [vmem:[#allocation6] sm:$0xff]
    %v1087 = vld [vmem:[#allocation6 + $0x8] sm:$0xff]
    %v1088 = vld [vmem:[#allocation6 + $0x10] sm:$0xff]
    %v1089 = vld [vmem:[#allocation6 + $0x18] sm:$0xff]
    %v1090 = vld [vmem:[#allocation6 + $0x20] sm:$0xff]
    %v1091 = vld [vmem:[#allocation6 + $0x28] sm:$0xff]
    %v1092 = vld [vmem:[#allocation6 + $0x30] sm:$0xff]
    %v1093 = vld [vmem:[#allocation6 + $0x38] sm:$0xff]
    %v1094 = vld [vmem:[%s5] sm:$0x1]
    %v1096 = vrot.slane %v1085, 7
    %1097 = vrot.lane.b32.xlu0 %v1096, 64
    %v1098 = vpop.permute.xlu0 %1097
    %v1099 = vsel %vm212, %v1098, 0
    %1101 = vmatprep.subr.mxu0 0.0
    %1102 = vmatpush1.msra.mxu0 0.0
    %1103 = vmatprep.subr.mxu0 0.0
    %1104 = vmatpush1.msra.mxu0 0.0
    %1105 = vmatprep.subr.mxu0 0.0
    %1106 = vmatpush1.msra.mxu0 0.0
    %1107 = vmatprep.subr.mxu0 0.0
    %1108 = vmatpush1.msra.mxu0 0.0
    %1109 = vmatprep.subr.mxu0 0.0
    %1110 = vmatpush1.msra.mxu0 0.0
    %1111 = vmatprep.subr.mxu0 0.0
    %1112 = vmatpush1.msra.mxu0 0.0
    %1113 = vmatprep.subr.mxu0 0.0
    %1114 = vmatpush1.msra.mxu0 0.0
    %1115 = vmatprep.subr.mxu0 0.0
    %1116 = vmatpush1.msra.mxu0 0.0
    %1117 = vmatprep.subr.mxu0 0.0
    %1118 = vmatpush1.msra.mxu0 %v1093
    %1119 = vmatprep.subr.mxu0 0.0
    %1120 = vmatpush1.msra.mxu0 %v1092
    %1121 = vmatprep.subr.mxu0 0.0
    %1122 = vmatpush1.msra.mxu0 %v1091
    %1123 = vmatprep.subr.mxu0 0.0
    %1124 = vmatpush1.msra.mxu0 %v1090
    %1125 = vmatprep.subr.mxu0 0.0
    %1126 = vmatpush1.msra.mxu0 %v1089
    %1127 = vmatprep.subr.mxu0 0.0
    %1128 = vmatpush1.msra.mxu0 %v1088
    %1129 = vmatprep.subr.mxu0 0.0
    %1130 = vmatpush1.msra.mxu0 %v1087
    %1131 = vmatprep.subr.mxu0 0.0
    %1132 = vmatpush1.msra.mxu0 %v1086
    %1133 = vmatprep.subr.mxu0 0.0
    %1134 = vmatpush2.msra.mxu0 0.0
    %1135 = vmatprep.subr.mxu0 0.0
    %1136 = vmatpush2.msra.mxu0 0.0
    %1137 = vmatprep.subr.mxu0 0.0
    %1138 = vmatpush2.msra.mxu0 0.0
    %1139 = vmatprep.subr.mxu0 0.0
    %1140 = vmatpush2.msra.mxu0 0.0
    %1141 = vmatprep.subr.mxu0 0.0
    %1142 = vmatpush2.msra.mxu0 0.0
    %1143 = vmatprep.subr.mxu0 0.0
    %1144 = vmatpush2.msra.mxu0 0.0
    %1145 = vmatprep.subr.mxu0 0.0
    %1146 = vmatpush2.msra.mxu0 0.0
    %1147 = vmatprep.subr.mxu0 0.0
    %1148 = vmatpush2.msra.mxu0 0.0
    %1149 = vmatprep.subr.mxu0 0.0
    %1150 = vmatpush2.msra.mxu0 0.0
    %1151 = vmatprep.subr.mxu0 0.0
    %1152 = vmatpush2.msra.mxu0 0.0
    %1153 = vmatprep.subr.mxu0 0.0
    %1154 = vmatpush2.msra.mxu0 0.0
    %1155 = vmatprep.subr.mxu0 0.0
    %1156 = vmatpush2.msra.mxu0 0.0
    %1157 = vmatprep.subr.mxu0 0.0
    %1158 = vmatpush2.msra.mxu0 0.0
    %1159 = vmatprep.subr.mxu0 0.0
    %1160 = vmatpush2.msra.mxu0 0.0
    %1161 = vmatprep.subr.mxu0 0.0
    %1162 = vmatpush2.msra.mxu0 0.0
    %1163 = vmatprep.subr.mxu0 0.0
    %1164 = vmatpush2.msra.mxu0 0.0
    %1165 = vmatprep.mubr.f32.mxu0 0.0
    %1166 = vmatmul.mubr.f32.gmra.mxu0 %v1099
    %v1167 = vpop.f32.mrf.mxu0
    %v1168 = vadd.f32 %v1094, %v1167
    %v1169 = vpop.f32.mrf.mxu0
    %1170 = vdwg.mxu0
    %1171 = vst [vmem:[%s6] sm:$0x1] %v1168
    // Predicated region
    $region38: #{rnn_forward.1} parent=1 // pred_check
      _
    $region39: #{rnn_forward.1} parent=1 // pred_check_branch
      %1173 = sbr.rel (0) target = $region41
    $region40: #{rnn_forward.1} parent=1 // pred_region
      _
    $region41: #{rnn_forward.1} parent=1 // pred_fallthru
      _
    // Predicated region
    $region42: #{rnn_forward.1} parent=1 // pred_check
      _
    $region43: #{rnn_forward.1} parent=1 // pred_check_branch
      %1175 = sbr.rel (0) target = $region45
    $region44: #{rnn_forward.1} parent=1 // pred_region
      _
    $region45: #{rnn_forward.1} parent=1 // pred_fallthru
      _
    %1176 = vsyncpa [#allocation3], 1
    %1177 = vsyncpa [#allocation5], 1

</llo_original>
